<compile_context>
chip_gen: v7x
topology: tpu7x:2x2x1
jax: 0.10.0
libtpu: 0.0.40
codegen_flags: <defaults>
</compile_context>

<pallas_src>
import jax
import jax.numpy as jnp
from jax.experimental import pallas as pl
from jax.experimental.pallas import tpu as pltpu

D_MODEL = 2          # matches `d_model = 2` in the PyTorch file
SEQ_LEN = 16
N_CLASSES = 6
BATCH = 2
EPS = 1e-5           # nn.LayerNorm default eps

H1, H2, H3 = 512, 256, 128
OUT_PAD = 128                      # lane-dense padded output width
B1_OFF = 0
B2_OFF = H1                        # 512
B3_OFF = H1 + H2                   # 768
B4_OFF = H1 + H2 + H3              # 896
B_TOT = H1 + H2 + H3 + OUT_PAD     # 1024  (all offsets are 128-aligned)


def _head_kernel(x_ref, w1_ref, w2_ref, w3_ref, w4_ref, b_ref, o_ref):
    # x_ref: (2, TB, S) de-interleaved input; [0] = d=0 component, [1] = d=1.
    xe = x_ref[0].astype(jnp.float32)
    xo = x_ref[1].astype(jnp.float32)

    # LayerNorm over each d_model(=2)-sized pair, done on the VPU (no pair-sum
    # matmul, no roll).  gamma/beta and the (+n, -n) structure are folded into
    # w1 / b1 in prepare_params(), so only `n` is needed here.
    c = (xe - xo) * 0.5
    n = c * jax.lax.rsqrt(c * c + EPS)                       # (TB, S) f32

    # 4-layer MLP: bf16 operands into the MXU, f32 accumulation, f32 elementwise.
    h = jnp.dot(n.astype(jnp.bfloat16), w1_ref[...],
                preferred_element_type=jnp.float32) + b_ref[:, B1_OFF:B1_OFF + H1]
    h = jnp.maximum(h, 0.0)
    h = jnp.dot(h.astype(jnp.bfloat16), w2_ref[...],
                preferred_element_type=jnp.float32) + b_ref[:, B2_OFF:B2_OFF + H2]
    h = jnp.maximum(h, 0.0)
    h = jnp.dot(h.astype(jnp.bfloat16), w3_ref[...],
                preferred_element_type=jnp.float32) + b_ref[:, B3_OFF:B3_OFF + H3]
    h = jnp.maximum(h, 0.0)
    out = jnp.dot(h.astype(jnp.bfloat16), w4_ref[...],
                  preferred_element_type=jnp.float32) + b_ref[:, B4_OFF:B4_OFF + OUT_PAD]
    o_ref[...] = out.astype(o_ref.dtype)                     # lane-dense (TB, 128) store


def prepare_params(params):
    """One-time weight prep, hoisted out of the per-call path."""
    gamma, beta = params["gamma"], params["beta"]
    w1, b1 = params["w1"], params["b1"]

    # Rows of w1 corresponding to d=0 / d=1 of each sequence step (flatten order).
    w1e, w1o = w1[0::2], w1[1::2]                            # each (S, H1)
    # Fold LN affine and the (+n, -n) antisymmetry of the 2-element LayerNorm:
    #   y0 = gamma0*n + beta0 ,  y1 = -gamma1*n + beta1
    w1_fold = gamma[0] * w1e - gamma[1] * w1o                # (S, H1)
    b1_fold = b1 + beta[0] * w1e.sum(0) + beta[1] * w1o.sum(0)

    # Pad the last layer to 128 output columns for lane-dense stores.
    w4_pad = jnp.zeros((H3, OUT_PAD), jnp.float32).at[:, :N_CLASSES].set(params["w4"])
    b4_pad = jnp.zeros((OUT_PAD,), jnp.float32).at[:N_CLASSES].set(params["b4"])

    biases = jnp.concatenate([b1_fold, params["b2"], params["b3"], b4_pad]).reshape(1, B_TOT)

    return dict(
        w1=w1_fold.astype(jnp.bfloat16),
        w2=params["w2"].astype(jnp.bfloat16),
        w3=params["w3"].astype(jnp.bfloat16),
        w4=w4_pad.astype(jnp.bfloat16),
        b=biases.astype(jnp.float32),
    )


def classification_head(x, prep):
    """x: (B, seq_len, d_model=2) float32 -> (B, n_classes) float32."""
    B, S, D = x.shape
    assert D == D_MODEL == 2

    # nn.Flatten() glue: de-interleave the d=0 / d=1 components so the kernel
    # needs no in-kernel reshape / roll / pair-sum matrix.
    x_eo = jnp.transpose(x, (2, 0, 1))                       # (2, B, S)

    tile_b = B if B <= 256 else 256
    assert B % tile_b == 0, "batch must tile evenly"
    grid = (B // tile_b,)

    out = pl.pallas_call(
        _head_kernel,
        out_shape=jax.ShapeDtypeStruct((B, OUT_PAD), jnp.float32),
        grid=grid,
        in_specs=[
            pl.BlockSpec((2, tile_b, S), lambda i: (0, i, 0)),   # activations, tiled on batch
            pl.BlockSpec((S, H1), lambda i: (0, 0)),             # weights: resident across grid
            pl.BlockSpec((H1, H2), lambda i: (0, 0)),
            pl.BlockSpec((H2, H3), lambda i: (0, 0)),
            pl.BlockSpec((H3, OUT_PAD), lambda i: (0, 0)),
            pl.BlockSpec((1, B_TOT), lambda i: (0, 0)),          # all biases, one lane-dense DMA
        ],
        out_specs=pl.BlockSpec((tile_b, OUT_PAD), lambda i: (i, 0)),
        compiler_params=pltpu.CompilerParams(dimension_semantics=("parallel",)),
    )(x_eo, prep["w1"], prep["w2"], prep["w3"], prep["w4"], prep["b"])
    return out[:, :N_CLASSES]


def init_params(key):
    ks = jax.random.split(key, 8)

    def lin(kw, kb, fan_in, fan_out):
        bound = 1.0 / (fan_in ** 0.5)          # PyTorch nn.Linear default init range
        w = jax.random.uniform(kw, (fan_in, fan_out), jnp.float32, -bound, bound)
        b = jax.random.uniform(kb, (fan_out,), jnp.float32, -bound, bound)
        return w, b

    w1, b1 = lin(ks[0], ks[1], D_MODEL * SEQ_LEN, H1)
    w2, b2 = lin(ks[2], ks[3], H1, H2)
    w3, b3 = lin(ks[4], ks[5], H2, H3)
    w4, b4 = lin(ks[6], ks[7], H3, N_CLASSES)
    return dict(
        gamma=jnp.ones((D_MODEL,), jnp.float32),   # nn.LayerNorm default weight
        beta=jnp.zeros((D_MODEL,), jnp.float32),   # nn.LayerNorm default bias
        w1=w1, b1=b1, w2=w2, b2=b2, w3=w3, b3=b3, w4=w4, b4=b4,
    )


def reference(x, params):
    mean = x.mean(-1, keepdims=True)
    var = ((x - mean) ** 2).mean(-1, keepdims=True)
    xn = (x - mean) / jnp.sqrt(var + EPS) * params["gamma"] + params["beta"]
    h = xn.reshape(x.shape[0], -1)
    h = jnp.maximum(h @ params["w1"] + params["b1"], 0.0)
    h = jnp.maximum(h @ params["w2"] + params["b2"], 0.0)
    h = jnp.maximum(h @ params["w3"] + params["b3"], 0.0)
    return h @ params["w4"] + params["b4"]


if __name__ == "__main__":
    key = jax.random.PRNGKey(0)
    kx, kp = jax.random.split(key)
    x = jax.random.normal(kx, (BATCH, SEQ_LEN, D_MODEL), jnp.float32)
    params = init_params(kp)
    prep = prepare_params(params)       # one-time prep, hoisted out of the call path

    out = classification_head(x, prep)
    out = jax.block_until_ready(out)

    ref = reference(x, params)
    assert out.shape == (BATCH, N_CLASSES)
    # Tolerance accounts for bf16 weight/activation quantization into the MXU.
    assert bool(jnp.allclose(out, ref, atol=2e-2, rtol=2e-2)), (out, ref)
    print("KERNEL_OK")
</pallas_src>

<mosaic_0001>
module attributes {stable_mosaic.version = 11 : i64} {
  func.func @_head_kernel(%arg0: i32, %arg1: memref<2x2x16xf32, #tpu.memory_space<vmem>>, %arg2: memref<16x512xbf16, #tpu.memory_space<vmem>>, %arg3: memref<512x256xbf16, #tpu.memory_space<vmem>>, %arg4: memref<256x128xbf16, #tpu.memory_space<vmem>>, %arg5: memref<128x128xbf16, #tpu.memory_space<vmem>>, %arg6: memref<1x1024xf32, #tpu.memory_space<vmem>>, %arg7: memref<2x128xf32, #tpu.memory_space<vmem>>) attributes {dimension_semantics = [#tpu.dimension_semantics<parallel>], iteration_bounds = array<i64: 1>, scalar_prefetch = 0 : i64, scratch_operands = 0 : i64, tpu.core_type = #tpu.core_type<tc>, window_params = [{transform_indices = @transform_0, window_bounds = array<i64: 2, 2, 16>}, {pipeline_mode = #tpu.pipeline_mode<synchronous>, transform_indices = @transform_1, window_bounds = array<i64: 16, 512>}, {pipeline_mode = #tpu.pipeline_mode<synchronous>, transform_indices = @transform_2, window_bounds = array<i64: 512, 256>}, {pipeline_mode = #tpu.pipeline_mode<synchronous>, transform_indices = @transform_3, window_bounds = array<i64: 256, 128>}, {pipeline_mode = #tpu.pipeline_mode<synchronous>, transform_indices = @transform_4, window_bounds = array<i64: 128, 128>}, {pipeline_mode = #tpu.pipeline_mode<synchronous>, transform_indices = @transform_5, window_bounds = array<i64: 1, 1024>}, {transform_indices = @transform_6, window_bounds = array<i64: 2, 128>}]} {
    %c0 = arith.constant 0 : index
    %c0_0 = arith.constant 0 : index
    %c0_1 = arith.constant 0 : index
    %0 = vector.load %arg1[%c0, %c0_0, %c0_1] : memref<2x2x16xf32, #tpu.memory_space<vmem>>, vector<1x2x16xf32>
    %1 = vector.shape_cast %0 : vector<1x2x16xf32> to vector<2x16xf32>
    %c1 = arith.constant 1 : index
    %c0_2 = arith.constant 0 : index
    %c0_3 = arith.constant 0 : index
    %2 = vector.load %arg1[%c1, %c0_2, %c0_3] : memref<2x2x16xf32, #tpu.memory_space<vmem>>, vector<1x2x16xf32>
    %3 = vector.shape_cast %2 : vector<1x2x16xf32> to vector<2x16xf32>
    %4 = arith.subf %1, %3 : vector<2x16xf32>
    %cst = arith.constant 5.000000e-01 : f32
    %5 = vector.broadcast %cst : f32 to vector<2x16xf32>
    %6 = arith.mulf %4, %5 : vector<2x16xf32>
    %7 = arith.mulf %6, %6 : vector<2x16xf32>
    %cst_4 = arith.constant 9.99999974E-6 : f32
    %8 = vector.broadcast %cst_4 : f32 to vector<2x16xf32>
    %9 = arith.addf %7, %8 : vector<2x16xf32>
    %10 = math.rsqrt %9 : vector<2x16xf32>
    %11 = arith.mulf %6, %10 : vector<2x16xf32>
    %12 = arith.truncf %11 : vector<2x16xf32> to vector<2x16xbf16>
    %c0_5 = arith.constant 0 : index
    %c0_6 = arith.constant 0 : index
    %13 = vector.load %arg2[%c0_5, %c0_6] : memref<16x512xbf16, #tpu.memory_space<vmem>>, vector<16x512xbf16>
    %cst_7 = arith.constant dense<0.000000e+00> : vector<2x512xf32>
    %14 = tpu.matmul %12, %13, %cst_7 {dimension_numbers = #tpu.dot_dimension_numbers<[1], [0], [0], [1], [0, 0, 1, 1], [], []>} : vector<2x16xbf16>, vector<16x512xbf16>, vector<2x512xf32> -> vector<2x512xf32>
    %c0_8 = arith.constant 0 : index
    %c0_9 = arith.constant 0 : index
    %15 = vector.load %arg6[%c0_8, %c0_9] : memref<1x1024xf32, #tpu.memory_space<vmem>>, vector<1x512xf32>
    %16 = vector.broadcast %15 : vector<1x512xf32> to vector<2x512xf32>
    %17 = arith.addf %14, %16 : vector<2x512xf32>
    %cst_10 = arith.constant 0.000000e+00 : f32
    %18 = vector.broadcast %cst_10 : f32 to vector<2x512xf32>
    %19 = arith.maximumf %17, %18 : vector<2x512xf32>
    %20 = arith.truncf %19 : vector<2x512xf32> to vector<2x512xbf16>
    %c0_11 = arith.constant 0 : index
    %c0_12 = arith.constant 0 : index
    %21 = vector.load %arg3[%c0_11, %c0_12] : memref<512x256xbf16, #tpu.memory_space<vmem>>, vector<512x256xbf16>
    %cst_13 = arith.constant dense<0.000000e+00> : vector<2x256xf32>
    %22 = tpu.matmul %20, %21, %cst_13 {dimension_numbers = #tpu.dot_dimension_numbers<[1], [0], [0], [1], [0, 0, 1, 1], [], []>} : vector<2x512xbf16>, vector<512x256xbf16>, vector<2x256xf32> -> vector<2x256xf32>
    %c0_14 = arith.constant 0 : index
    %c512 = arith.constant 512 : index
    %23 = vector.load %arg6[%c0_14, %c512] : memref<1x1024xf32, #tpu.memory_space<vmem>>, vector<1x256xf32>
    %24 = vector.broadcast %23 : vector<1x256xf32> to vector<2x256xf32>
    %25 = arith.addf %22, %24 : vector<2x256xf32>
    %cst_15 = arith.constant 0.000000e+00 : f32
    %26 = vector.broadcast %cst_15 : f32 to vector<2x256xf32>
    %27 = arith.maximumf %25, %26 : vector<2x256xf32>
    %28 = arith.truncf %27 : vector<2x256xf32> to vector<2x256xbf16>
    %c0_16 = arith.constant 0 : index
    %c0_17 = arith.constant 0 : index
    %29 = vector.load %arg4[%c0_16, %c0_17] : memref<256x128xbf16, #tpu.memory_space<vmem>>, vector<256x128xbf16>
    %cst_18 = arith.constant dense<0.000000e+00> : vector<2x128xf32>
    %30 = tpu.matmul %28, %29, %cst_18 {dimension_numbers = #tpu.dot_dimension_numbers<[1], [0], [0], [1], [0, 0, 1, 1], [], []>} : vector<2x256xbf16>, vector<256x128xbf16>, vector<2x128xf32> -> vector<2x128xf32>
    %c0_19 = arith.constant 0 : index
    %c768 = arith.constant 768 : index
    %31 = vector.load %arg6[%c0_19, %c768] : memref<1x1024xf32, #tpu.memory_space<vmem>>, vector<1x128xf32>
    %32 = vector.broadcast %31 : vector<1x128xf32> to vector<2x128xf32>
    %33 = arith.addf %30, %32 : vector<2x128xf32>
    %cst_20 = arith.constant 0.000000e+00 : f32
    %34 = vector.broadcast %cst_20 : f32 to vector<2x128xf32>
    %35 = arith.maximumf %33, %34 : vector<2x128xf32>
    %36 = arith.truncf %35 : vector<2x128xf32> to vector<2x128xbf16>
    %c0_21 = arith.constant 0 : index
    %c0_22 = arith.constant 0 : index
    %37 = vector.load %arg5[%c0_21, %c0_22] : memref<128x128xbf16, #tpu.memory_space<vmem>>, vector<128x128xbf16>
    %cst_23 = arith.constant dense<0.000000e+00> : vector<2x128xf32>
    %38 = tpu.matmul %36, %37, %cst_23 {dimension_numbers = #tpu.dot_dimension_numbers<[1], [0], [0], [1], [0, 0, 1, 1], [], []>} : vector<2x128xbf16>, vector<128x128xbf16>, vector<2x128xf32> -> vector<2x128xf32>
    %c0_24 = arith.constant 0 : index
    %c896 = arith.constant 896 : index
    %39 = vector.load %arg6[%c0_24, %c896] : memref<1x1024xf32, #tpu.memory_space<vmem>>, vector<1x128xf32>
    %40 = vector.broadcast %39 : vector<1x128xf32> to vector<2x128xf32>
    %41 = arith.addf %38, %40 : vector<2x128xf32>
    %c0_25 = arith.constant 0 : index
    %c0_26 = arith.constant 0 : index
    %42 = vector.load %arg7[%c0_25, %c0_26] : memref<2x128xf32, #tpu.memory_space<vmem>>, vector<2x128xf32>
    tpu.vector_store %arg7[%c0_25, %c0_26], %41 {strides = array<i32>} : memref<2x128xf32, #tpu.memory_space<vmem>>, vector<2x128xf32>,
    return
  }
  func.func @transform_0(%arg0: i32) -> (i32, i32, i32) {
    %c0_i32 = arith.constant 0 : i32
    %c0_i32_0 = arith.constant 0 : i32
    %c0_i32_1 = arith.constant 0 : i32
    return %c0_i32, %arg0, %c0_i32_0 : i32, i32, i32
  }
  func.func @transform_1(%arg0: i32) -> (i32, i32) {
    %c0_i32 = arith.constant 0 : i32
    %c0_i32_0 = arith.constant 0 : i32
    %c0_i32_1 = arith.constant 0 : i32
    return %c0_i32, %c0_i32_0 : i32, i32
  }
  func.func @transform_2(%arg0: i32) -> (i32, i32) {
    %c0_i32 = arith.constant 0 : i32
    %c0_i32_0 = arith.constant 0 : i32
    %c0_i32_1 = arith.constant 0 : i32
    return %c0_i32, %c0_i32_0 : i32, i32
  }
  func.func @transform_3(%arg0: i32) -> (i32, i32) {
    %c0_i32 = arith.constant 0 : i32
    %c0_i32_0 = arith.constant 0 : i32
    %c0_i32_1 = arith.constant 0 : i32
    return %c0_i32, %c0_i32_0 : i32, i32
  }
  func.func @transform_4(%arg0: i32) -> (i32, i32) {
    %c0_i32 = arith.constant 0 : i32
    %c0_i32_0 = arith.constant 0 : i32
    %c0_i32_1 = arith.constant 0 : i32
    return %c0_i32, %c0_i32_0 : i32, i32
  }
  func.func @transform_5(%arg0: i32) -> (i32, i32) {
    %c0_i32 = arith.constant 0 : i32
    %c0_i32_0 = arith.constant 0 : i32
    %c0_i32_1 = arith.constant 0 : i32
    return %c0_i32, %c0_i32_0 : i32, i32
  }
  func.func @transform_6(%arg0: i32) -> (i32, i32) {
    %c0_i32 = arith.constant 0 : i32
    %c0_i32_0 = arith.constant 0 : i32
    return %arg0, %c0_i32 : i32, i32
  }
}

</mosaic_0001>

<llo_original>
// kernel: tpu_custom_call.1
$region0: #{tpu_custom_call.1}
  #allocation0 [shape = 'u32[]', space=smem, size = 0x4, offset = 0x4, fixed_abs, tag = 'smem constant byte address 0x4 - core index']
  #allocation1 [shape = 'u32[144,128]{1,0:T(1,128)}', space=vmem, size = 0x12000, scoped, tag = 'internal scratch']
  %s0 = inlined_call_operand.hbm [shape: f32[2,2,16], index: 0, kind: input, shape index: {}]
  %s1 = inlined_call_operand.hbm [shape: bf16[16,512], index: 1, kind: input, shape index: {}]
  %s2 = inlined_call_operand.hbm [shape: bf16[512,256], index: 2, kind: input, shape index: {}]
  %s3 = inlined_call_operand.hbm [shape: bf16[256,128], index: 3, kind: input, shape index: {}]
  %s4 = inlined_call_operand.hbm [shape: bf16[128,128], index: 4, kind: input, shape index: {}]
  %s5 = inlined_call_operand.vmem [shape: f32[1,1024], index: 5, kind: input, shape index: {}]
  %s6 = inlined_call_operand.hbm [shape: f32[2,128], index: 6, kind: output, shape index: {}]
  %s7 = sld [smem:[#allocation0]]
  $region54: #{tpu_custom_call.1} parent=0
    _
  %s9 = ssub.s32 1, %s7
  %s10 = scalar_select 0, %s9, %s7
  $region1: #{tpu_custom_call.1} parent=0
    #allocation2 [shape = 'u8[2048]{0}', space=vmem, size = 0x800, scoped, tag = 'input window, operand 0, single buffered']
    #allocation3 [shape = 's32[1]{0}', space=sflag, size = 0x4, scoped, tag = 'scoped memory for tpu_custom_call.1']
    #allocation4 [shape = 's32[1]{0}', space=sflag, size = 0x4, scoped, tag = 'scoped memory for tpu_custom_call.1']
    #allocation5 [shape = 'u8[16384]{0}', space=vmem, size = 0x4000, scoped, tag = 'input window, operand 1, single buffered']
    #allocation6 [shape = 's32[1]{0}', space=sflag, size = 0x4, scoped, tag = 'scoped memory for tpu_custom_call.1']
    #allocation7 [shape = 'u8[262144]{0}', space=vmem, size = 0x40000, scoped, tag = 'input window, operand 2, single buffered']
    #allocation8 [shape = 'u8[65536]{0}', space=vmem, size = 0x10000, scoped, tag = 'input window, operand 3, single buffered']
    #allocation9 [shape = 's32[1]{0}', space=sflag, size = 0x4, scoped, tag = 'scoped memory for tpu_custom_call.1']
    #allocation10 [shape = 'u8[32768]{0}', space=vmem, size = 0x8000, scoped, tag = 'input window, operand 4, single buffered']
    #allocation11 [shape = 'u8[1024]{0}', space=vmem, size = 0x400, scoped, tag = 'output window, operand 0, single buffered']
    %11 = vsyncpa [#allocation3], 0
    %12 = vsyncpa [#allocation6], 0
    %13 = vsyncpa [#allocation9], 0
    %14 = vsyncpa [#allocation4], 0
    // Predicated region
    $region2: #{tpu_custom_call.1} parent=1 // pred_check
      _
    $region3: #{tpu_custom_call.1} parent=1 // pred_check_branch
      %16 = sbr.rel (0) target = $region5
    $region4: #{tpu_custom_call.1} parent=1 // pred_region
      %s18 = ssub.s32 64, 64
      %19 = vsyncadd [#allocation3], %s18
      %s20 = sshll.u32 [#allocation2], 4
      %s21 = int_to_ptr.vmem [resolvable:$true] %s20
      %26 = dma.hbm_to_vmem [thread:$0]  %s0, 64, %s21, [#allocation3], 32, 32, 2
    $region5: #{tpu_custom_call.1} parent=1 // pred_fallthru
      _
    // Predicated region
    $region6: #{tpu_custom_call.1} parent=1 // pred_check
      _
    $region7: #{tpu_custom_call.1} parent=1 // pred_check_branch
      %28 = sbr.rel (0) target = $region9
    $region8: #{tpu_custom_call.1} parent=1 // pred_region
      %s30 = ssub.s32 512, 512
      %31 = vsyncadd [#allocation6], %s30
      %s32 = sshll.u32 [#allocation5], 4
      %s33 = int_to_ptr.vmem [resolvable:$true] %s32
      %38 = dma.hbm_to_vmem [thread:$0]  %s1, 512, %s33, [#allocation6], 256, 256, 16
    $region9: #{tpu_custom_call.1} parent=1 // pred_fallthru
      _
    // Predicated region
    $region10: #{tpu_custom_call.1} parent=1 // pred_check
      _
    $region11: #{tpu_custom_call.1} parent=1 // pred_check_branch
      %40 = sbr.rel (0) target = $region13
    $region12: #{tpu_custom_call.1} parent=1 // pred_region
      %s42 = ssub.s32 8192, 8192
      %43 = vsyncadd [#allocation6], %s42
      %s44 = sshll.u32 [#allocation7], 4
      %s45 = int_to_ptr.vmem [resolvable:$true] %s44
      %50 = dma.hbm_to_vmem [thread:$0]  %s2, 8192, %s45, [#allocation6], 128, 128, 8
    $region13: #{tpu_custom_call.1} parent=1 // pred_fallthru
      _
    // Predicated region
    $region14: #{tpu_custom_call.1} parent=1 // pred_check
      _
    $region15: #{tpu_custom_call.1} parent=1 // pred_check_branch
      %52 = sbr.rel (0) target = $region17
    $region16: #{tpu_custom_call.1} parent=1 // pred_region
      %s54 = ssub.s32 2048, 2048
      %55 = vsyncadd [#allocation9], %s54
      %s56 = sshll.u32 [#allocation8], 4
      %s57 = int_to_ptr.vmem [resolvable:$true] %s56
      %62 = dma.hbm_to_vmem [thread:$0]  %s3, 2048, %s57, [#allocation9], 64, 64, 4
    $region17: #{tpu_custom_call.1} parent=1 // pred_fallthru
      _
    // Predicated region
    $region18: #{tpu_custom_call.1} parent=1 // pred_check
      _
    $region19: #{tpu_custom_call.1} parent=1 // pred_check_branch
      %64 = sbr.rel (0) target = $region21
    $region20: #{tpu_custom_call.1} parent=1 // pred_region
      %s66 = ssub.s32 1024, 1024
      %67 = vsyncadd [#allocation9], %s66
      %s68 = sshll.u32 [#allocation10], 4
      %s69 = int_to_ptr.vmem [resolvable:$true] %s68
      %74 = dma.hbm_to_vmem [thread:$0]  %s4, 1024, %s69, [#allocation9], 64, 64, 4
    $region21: #{tpu_custom_call.1} parent=1 // pred_fallthru
      _
    // Predicated region
    $region22: #{tpu_custom_call.1} parent=1 // pred_check
      _
    $region23: #{tpu_custom_call.1} parent=1 // pred_check_branch
      %76 = sbr.rel (0) target = $region25
    $region24: #{tpu_custom_call.1} parent=1 // pred_region
      _
    $region25: #{tpu_custom_call.1} parent=1 // pred_fallthru
      _
    // Predicated region
    $region26: #{tpu_custom_call.1} parent=1 // pred_check
      _
    $region27: #{tpu_custom_call.1} parent=1 // pred_check_branch
      %78 = sbr.rel (0) target = $region29
    $region28: #{tpu_custom_call.1} parent=1 // pred_region
      %79 = dma.done [#allocation3], 64
    $region29: #{tpu_custom_call.1} parent=1 // pred_fallthru
      _
    // Predicated region
    $region30: #{tpu_custom_call.1} parent=1 // pred_check
      _
    $region31: #{tpu_custom_call.1} parent=1 // pred_check_branch
      %81 = sbr.rel (0) target = $region33
    $region32: #{tpu_custom_call.1} parent=1 // pred_region
      %82 = dma.done [#allocation6], 512
    $region33: #{tpu_custom_call.1} parent=1 // pred_fallthru
      _
    // Predicated region
    $region34: #{tpu_custom_call.1} parent=1 // pred_check
      _
    $region35: #{tpu_custom_call.1} parent=1 // pred_check_branch
      %84 = sbr.rel (0) target = $region37
    $region36: #{tpu_custom_call.1} parent=1 // pred_region
      %85 = dma.done [#allocation6], 8192
    $region37: #{tpu_custom_call.1} parent=1 // pred_fallthru
      _
    // Predicated region
    $region38: #{tpu_custom_call.1} parent=1 // pred_check
      _
    $region39: #{tpu_custom_call.1} parent=1 // pred_check_branch
      %87 = sbr.rel (0) target = $region41
    $region40: #{tpu_custom_call.1} parent=1 // pred_region
      %88 = dma.done [#allocation9], 2048
    $region41: #{tpu_custom_call.1} parent=1 // pred_fallthru
      _
    // Predicated region
    $region42: #{tpu_custom_call.1} parent=1 // pred_check
      _
    $region43: #{tpu_custom_call.1} parent=1 // pred_check_branch
      %90 = sbr.rel (0) target = $region45
    $region44: #{tpu_custom_call.1} parent=1 // pred_region
      %91 = dma.done [#allocation9], 1024
    $region45: #{tpu_custom_call.1} parent=1 // pred_fallthru
      _
    %v93 = vld [vmem:[#allocation2] sm:$0x3]
    %s94 = scalar_lea.vmem [#allocation2], 2
    %v95 = vld [vmem:[%s94] sm:$0x3]
    %v96 = vsub.f32 %v93, %v95
    %v97 = vmul.f32 %v96, 0.5
    %v98 = vmul.f32 %v97, %v97
    %v99 = vadd.f32 %v98, 1e-05
    %v100 = vrsqrt.pop %v99
    %v101 = vmul.f32 %v97, %v100
    %v102 = vpack.c.bf16 %v101, %v101
    %v103 = vld [vmem:[#allocation5] sm:$0xff]
    %v104 = vld [vmem:[#allocation5 + $0x8] sm:$0xff]
    %v105 = vld [vmem:[#allocation5 + $0x10] sm:$0xff]
    %v106 = vld [vmem:[#allocation5 + $0x18] sm:$0xff]
    %v107 = vld [vmem:[%s5] sm:$0xf]
    %v109 = vlaneseq
    %v110 = vshrl.u32 %v109, 7
    %v111 = vsub.s32 0, %v110
    %v112 = vrot.slane %v107, %v111
    %v113 = vlaneseq
    %v114 = vshrl.u32 %v113, 7
    %v115 = vsub.s32 1, %v114
    %v116 = vrot.slane %v107, %v115
    %v117 = vlaneseq
    %v118 = vshrl.u32 %v117, 7
    %v119 = vsub.s32 2, %v118
    %v120 = vrot.slane %v107, %v119
    %v121 = vlaneseq
    %v122 = vshrl.u32 %v121, 7
    %v123 = vsub.s32 3, %v122
    %v124 = vrot.slane %v107, %v123
    %v133 = vunpack.c.l.b16 %v103
    %v134 = vunpack.c.h.b16 %v103
    %v135 = vunpack.c.l.b16 %v104
    %v136 = vunpack.c.h.b16 %v104
    %v137 = vunpack.c.l.b16 %v105
    %v138 = vunpack.c.h.b16 %v105
    %v139 = vunpack.c.l.b16 %v106
    %v140 = vunpack.c.h.b16 %v106
    %v141 = vpack.c.b16 %v137, %v133
    %v142 = vpack.c.b16 %v138, %v134
    %v143 = vpack.c.b16 %v139, %v135
    %v144 = vpack.c.b16 %v140, %v136
    %vm149 = vcmask 130048
    %v151 = vsel %vm149, %v102, 0
    %153 = vmatprep.subr.bf16.mxu0 %v142
    %154 = vmatpush1.bf16.msra.mxu0 %v141
    %155 = vmatprep.subr.bf16.mxu0 0
    %156 = vmatpush1.bf16.msra.mxu0 0
    %157 = vmatprep.subr.bf16.mxu0 0
    %158 = vmatpush1.bf16.msra.mxu0 0
    %159 = vmatprep.subr.bf16.mxu0 0
    %160 = vmatpush1.bf16.msra.mxu0 0
    %161 = vmatprep.subr.bf16.mxu0 0
    %162 = vmatpush1.bf16.msra.mxu0 0
    %163 = vmatprep.subr.bf16.mxu0 0
    %164 = vmatpush1.bf16.msra.mxu0 0
    %165 = vmatprep.subr.bf16.mxu0 0
    %166 = vmatpush1.bf16.msra.mxu0 0
    %167 = vmatprep.subr.bf16.mxu0 0
    %168 = vmatpush1.bf16.msra.mxu0 0
    %169 = vmatprep.subr.bf16.mxu0 0
    %170 = vmatpush1.bf16.msra.mxu0 0
    %171 = vmatprep.subr.bf16.mxu0 0
    %172 = vmatpush1.bf16.msra.mxu0 0
    %173 = vmatprep.subr.bf16.mxu0 0
    %174 = vmatpush1.bf16.msra.mxu0 0
    %175 = vmatprep.subr.bf16.mxu0 0
    %176 = vmatpush1.bf16.msra.mxu0 0
    %177 = vmatprep.subr.bf16.mxu0 0
    %178 = vmatpush1.bf16.msra.mxu0 0
    %179 = vmatprep.subr.bf16.mxu0 0
    %180 = vmatpush1.bf16.msra.mxu0 0
    %181 = vmatprep.subr.bf16.mxu0 0
    %182 = vmatpush1.bf16.msra.mxu0 0
    %183 = vmatprep.subr.bf16.mxu0 0
    %184 = vmatpush1.bf16.msra.mxu0 0
    %185 = vmatprep.mubr.bf16.mxu0 0
    %186 = vmatmul.mubr.bf16.gmra.mrb[0].mxu0 %v151
    %v187 = vpop.f32.mrb[0].mxu0
    %v188 = vadd.f32 %v112, %v187
    %v189 = vpop.f32.mrb[0].mxu0
    %v190 = vadd.f32 %v116, %v189
    %v191 = vpop.f32.mrb[0].mxu0
    %v192 = vpop.f32.mrb[0].mxu0
    %193 = vdwg.mxu0
    %194 = vmatprep.subr.bf16.mxu0 %v144
    %195 = vmatpush1.bf16.msra.mxu0 %v143
    %196 = vmatprep.subr.bf16.mxu0 0
    %197 = vmatpush1.bf16.msra.mxu0 0
    %198 = vmatprep.subr.bf16.mxu0 0
    %199 = vmatpush1.bf16.msra.mxu0 0
    %200 = vmatprep.subr.bf16.mxu0 0
    %201 = vmatpush1.bf16.msra.mxu0 0
    %202 = vmatprep.subr.bf16.mxu0 0
    %203 = vmatpush1.bf16.msra.mxu0 0
    %204 = vmatprep.subr.bf16.mxu0 0
    %205 = vmatpush1.bf16.msra.mxu0 0
    %206 = vmatprep.subr.bf16.mxu0 0
    %207 = vmatpush1.bf16.msra.mxu0 0
    %208 = vmatprep.subr.bf16.mxu0 0
    %209 = vmatpush1.bf16.msra.mxu0 0
    %210 = vmatprep.subr.bf16.mxu0 0
    %211 = vmatpush1.bf16.msra.mxu0 0
    %212 = vmatprep.subr.bf16.mxu0 0
    %213 = vmatpush1.bf16.msra.mxu0 0
    %214 = vmatprep.subr.bf16.mxu0 0
    %215 = vmatpush1.bf16.msra.mxu0 0
    %216 = vmatprep.subr.bf16.mxu0 0
    %217 = vmatpush1.bf16.msra.mxu0 0
    %218 = vmatprep.subr.bf16.mxu0 0
    %219 = vmatpush1.bf16.msra.mxu0 0
    %220 = vmatprep.subr.bf16.mxu0 0
    %221 = vmatpush1.bf16.msra.mxu0 0
    %222 = vmatprep.subr.bf16.mxu0 0
    %223 = vmatpush1.bf16.msra.mxu0 0
    %224 = vmatprep.subr.bf16.mxu0 0
    %225 = vmatpush1.bf16.msra.mxu0 0
    %226 = vmatprep.mubr.bf16.mxu0 0
    %227 = vmatmul.mubr.bf16.gmra.mrb[0].mxu0 %v151
    %v228 = vpop.f32.mrb[0].mxu0
    %v229 = vadd.f32 %v120, %v228
    %v230 = vpop.f32.mrb[0].mxu0
    %v231 = vadd.f32 %v124, %v230
    %v232 = vpop.f32.mrb[0].mxu0
    %v233 = vpop.f32.mrb[0].mxu0
    %234 = vdwg.mxu0
    %v235 = vmax.f32 %v188, 0.0
    %v236 = vmax.f32 %v190, 0.0
    %v237 = vmax.f32 %v229, 0.0
    %v238 = vmax.f32 %v231, 0.0
    %v239 = vpack.c.bf16 %v235, %v235
    %v240 = vpack.c.bf16 %v236, %v236
    %v241 = vpack.c.bf16 %v237, %v237
    %v242 = vpack.c.bf16 %v238, %v238
    %v243 = vld [vmem:[#allocation7] sm:$0xff]
    %v244 = vld [vmem:[#allocation7 + $0x8] sm:$0xff]
    %v245 = vld [vmem:[#allocation7 + $0x10] sm:$0xff]
    %v246 = vld [vmem:[#allocation7 + $0x18] sm:$0xff]
    %v247 = vld [vmem:[#allocation7 + $0x20] sm:$0xff]
    %v248 = vld [vmem:[#allocation7 + $0x28] sm:$0xff]
    %v249 = vld [vmem:[#allocation7 + $0x30] sm:$0xff]
    %v250 = vld [vmem:[#allocation7 + $0x38] sm:$0xff]
    %v251 = vld [vmem:[#allocation7 + $0x40] sm:$0xff]
    %v252 = vld [vmem:[#allocation7 + $0x48] sm:$0xff]
    %v253 = vld [vmem:[#allocation7 + $0x50] sm:$0xff]
    %v254 = vld [vmem:[#allocation7 + $0x58] sm:$0xff]
    %v255 = vld [vmem:[#allocation7 + $0x60] sm:$0xff]
    %v256 = vld [vmem:[#allocation7 + $0x68] sm:$0xff]
    %v257 = vld [vmem:[#allocation7 + $0x70] sm:$0xff]
    %v258 = vld [vmem:[#allocation7 + $0x78] sm:$0xff]
    %v259 = vld [vmem:[#allocation7 + $0x80] sm:$0xff]
    %v260 = vld [vmem:[#allocation7 + $0x88] sm:$0xff]
    %v261 = vld [vmem:[#allocation7 + $0x90] sm:$0xff]
    %v262 = vld [vmem:[#allocation7 + $0x98] sm:$0xff]
    %v263 = vld [vmem:[#allocation7 + $0xa0] sm:$0xff]
    %v264 = vld [vmem:[#allocation7 + $0xa8] sm:$0xff]
    %v265 = vld [vmem:[#allocation7 + $0xb0] sm:$0xff]
    %v266 = vld [vmem:[#allocation7 + $0xb8] sm:$0xff]
    %v267 = vld [vmem:[#allocation7 + $0xc0] sm:$0xff]
    %v268 = vld [vmem:[#allocation7 + $0xc8] sm:$0xff]
    %v269 = vld [vmem:[#allocation7 + $0xd0] sm:$0xff]
    %v270 = vld [vmem:[#allocation7 + $0xd8] sm:$0xff]
    %v271 = vld [vmem:[#allocation7 + $0xe0] sm:$0xff]
    %v272 = vld [vmem:[#allocation7 + $0xe8] sm:$0xff]
    %v273 = vld [vmem:[#allocation7 + $0xf0] sm:$0xff]
    %v274 = vld [vmem:[#allocation7 + $0xf8] sm:$0xff]
    %v275 = vld [vmem:[#allocation7 + $0x100] sm:$0xff]
    %v276 = vld [vmem:[#allocation7 + $0x108] sm:$0xff]
    %v277 = vld [vmem:[#allocation7 + $0x110] sm:$0xff]
    %v278 = vld [vmem:[#allocation7 + $0x118] sm:$0xff]
    %v279 = vld [vmem:[#allocation7 + $0x120] sm:$0xff]
    %v280 = vld [vmem:[#allocation7 + $0x128] sm:$0xff]
    %v281 = vld [vmem:[#allocation7 + $0x130] sm:$0xff]
    %v282 = vld [vmem:[#allocation7 + $0x138] sm:$0xff]
    %v283 = vld [vmem:[#allocation7 + $0x140] sm:$0xff]
    %v284 = vld [vmem:[#allocation7 + $0x148] sm:$0xff]
    %v285 = vld [vmem:[#allocation7 + $0x150] sm:$0xff]
    %v286 = vld [vmem:[#allocation7 + $0x158] sm:$0xff]
    %v287 = vld [vmem:[#allocation7 + $0x160] sm:$0xff]
    %v288 = vld [vmem:[#allocation7 + $0x168] sm:$0xff]
    %v289 = vld [vmem:[#allocation7 + $0x170] sm:$0xff]
    %v290 = vld [vmem:[#allocation7 + $0x178] sm:$0xff]
    %v291 = vld [vmem:[#allocation7 + $0x180] sm:$0xff]
    %v292 = vld [vmem:[#allocation7 + $0x188] sm:$0xff]
    %v293 = vld [vmem:[#allocation7 + $0x190] sm:$0xff]
    %v294 = vld [vmem:[#allocation7 + $0x198] sm:$0xff]
    %v295 = vld [vmem:[#allocation7 + $0x1a0] sm:$0xff]
    %v296 = vld [vmem:[#allocation7 + $0x1a8] sm:$0xff]
    %v297 = vld [vmem:[#allocation7 + $0x1b0] sm:$0xff]
    %v298 = vld [vmem:[#allocation7 + $0x1b8] sm:$0xff]
    %v299 = vld [vmem:[#allocation7 + $0x1c0] sm:$0xff]
    %v300 = vld [vmem:[#allocation7 + $0x1c8] sm:$0xff]
    %v301 = vld [vmem:[#allocation7 + $0x1d0] sm:$0xff]
    %v302 = vld [vmem:[#allocation7 + $0x1d8] sm:$0xff]
    %v303 = vld [vmem:[#allocation7 + $0x1e0] sm:$0xff]
    %v304 = vld [vmem:[#allocation7 + $0x1e8] sm:$0xff]
    %v305 = vld [vmem:[#allocation7 + $0x1f0] sm:$0xff]
    %v306 = vld [vmem:[#allocation7 + $0x1f8] sm:$0xff]
    %v307 = vld [vmem:[%s5 + $0x4] sm:$0x3]
    %v309 = vlaneseq
    %v310 = vshrl.u32 %v309, 7
    %v311 = vsub.s32 0, %v310
    %v312 = vrot.slane %v307, %v311
    %v313 = vlaneseq
    %v314 = vshrl.u32 %v313, 7
    %v315 = vsub.s32 1, %v314
    %v316 = vrot.slane %v307, %v315
    %v383 = vunpack.c.l.b16 %v243
    %v384 = vunpack.c.h.b16 %v243
    %v385 = vunpack.c.l.b16 %v244
    %v386 = vunpack.c.h.b16 %v244
    %v387 = vunpack.c.l.b16 %v245
    %v388 = vunpack.c.h.b16 %v245
    %v389 = vunpack.c.l.b16 %v246
    %v390 = vunpack.c.h.b16 %v246
    %v391 = vunpack.c.l.b16 %v247
    %v392 = vunpack.c.h.b16 %v247
    %v393 = vunpack.c.l.b16 %v248
    %v394 = vunpack.c.h.b16 %v248
    %v395 = vunpack.c.l.b16 %v249
    %v396 = vunpack.c.h.b16 %v249
    %v397 = vunpack.c.l.b16 %v250
    %v398 = vunpack.c.h.b16 %v250
    %v399 = vunpack.c.l.b16 %v251
    %v400 = vunpack.c.h.b16 %v251
    %v401 = vunpack.c.l.b16 %v252
    %v402 = vunpack.c.h.b16 %v252
    %v403 = vunpack.c.l.b16 %v253
    %v404 = vunpack.c.h.b16 %v253
    %v405 = vunpack.c.l.b16 %v254
    %v406 = vunpack.c.h.b16 %v254
    %v407 = vunpack.c.l.b16 %v255
    %v408 = vunpack.c.h.b16 %v255
    %v409 = vunpack.c.l.b16 %v256
    %v410 = vunpack.c.h.b16 %v256
    %v411 = vunpack.c.l.b16 %v257
    %v412 = vunpack.c.h.b16 %v257
    %v413 = vunpack.c.l.b16 %v258
    %v414 = vunpack.c.h.b16 %v258
    %v415 = vunpack.c.l.b16 %v259
    %v416 = vunpack.c.h.b16 %v259
    %v417 = vunpack.c.l.b16 %v260
    %v418 = vunpack.c.h.b16 %v260
    %v419 = vunpack.c.l.b16 %v261
    %v420 = vunpack.c.h.b16 %v261
    %v421 = vunpack.c.l.b16 %v262
    %v422 = vunpack.c.h.b16 %v262
    %v423 = vunpack.c.l.b16 %v263
    %v424 = vunpack.c.h.b16 %v263
    %v425 = vunpack.c.l.b16 %v264
    %v426 = vunpack.c.h.b16 %v264
    %v427 = vunpack.c.l.b16 %v265
    %v428 = vunpack.c.h.b16 %v265
    %v429 = vunpack.c.l.b16 %v266
    %v430 = vunpack.c.h.b16 %v266
    %v431 = vunpack.c.l.b16 %v267
    %v432 = vunpack.c.h.b16 %v267
    %v433 = vunpack.c.l.b16 %v268
    %v434 = vunpack.c.h.b16 %v268
    %v435 = vunpack.c.l.b16 %v269
    %v436 = vunpack.c.h.b16 %v269
    %v437 = vunpack.c.l.b16 %v270
    %v438 = vunpack.c.h.b16 %v270
    %v439 = vunpack.c.l.b16 %v271
    %v440 = vunpack.c.h.b16 %v271
    %v441 = vunpack.c.l.b16 %v272
    %v442 = vunpack.c.h.b16 %v272
    %v443 = vunpack.c.l.b16 %v273
    %v444 = vunpack.c.h.b16 %v273
    %v445 = vunpack.c.l.b16 %v274
    %v446 = vunpack.c.h.b16 %v274
    %v447 = vunpack.c.l.b16 %v275
    %v448 = vunpack.c.h.b16 %v275
    %v449 = vunpack.c.l.b16 %v276
    %v450 = vunpack.c.h.b16 %v276
    %v451 = vunpack.c.l.b16 %v277
    %v452 = vunpack.c.h.b16 %v277
    %v453 = vunpack.c.l.b16 %v278
    %v454 = vunpack.c.h.b16 %v278
    %v455 = vunpack.c.l.b16 %v279
    %v456 = vunpack.c.h.b16 %v279
    %v457 = vunpack.c.l.b16 %v280
    %v458 = vunpack.c.h.b16 %v280
    %v459 = vunpack.c.l.b16 %v281
    %v460 = vunpack.c.h.b16 %v281
    %v461 = vunpack.c.l.b16 %v282
    %v462 = vunpack.c.h.b16 %v282
    %v463 = vunpack.c.l.b16 %v283
    %v464 = vunpack.c.h.b16 %v283
    %v465 = vunpack.c.l.b16 %v284
    %v466 = vunpack.c.h.b16 %v284
    %v467 = vunpack.c.l.b16 %v285
    %v468 = vunpack.c.h.b16 %v285
    %v469 = vunpack.c.l.b16 %v286
    %v470 = vunpack.c.h.b16 %v286
    %v471 = vunpack.c.l.b16 %v287
    %v472 = vunpack.c.h.b16 %v287
    %v473 = vunpack.c.l.b16 %v288
    %v474 = vunpack.c.h.b16 %v288
    %v475 = vunpack.c.l.b16 %v289
    %v476 = vunpack.c.h.b16 %v289
    %v477 = vunpack.c.l.b16 %v290
    %v478 = vunpack.c.h.b16 %v290
    %v479 = vunpack.c.l.b16 %v291
    %v480 = vunpack.c.h.b16 %v291
    %v481 = vunpack.c.l.b16 %v292
    %v482 = vunpack.c.h.b16 %v292
    %v483 = vunpack.c.l.b16 %v293
    %v484 = vunpack.c.h.b16 %v293
    %v485 = vunpack.c.l.b16 %v294
    %v486 = vunpack.c.h.b16 %v294
    %v487 = vunpack.c.l.b16 %v295
    %v488 = vunpack.c.h.b16 %v295
    %v489 = vunpack.c.l.b16 %v296
    %v490 = vunpack.c.h.b16 %v296
    %v491 = vunpack.c.l.b16 %v297
    %v492 = vunpack.c.h.b16 %v297
    %v493 = vunpack.c.l.b16 %v298
    %v494 = vunpack.c.h.b16 %v298
    %v495 = vunpack.c.l.b16 %v299
    %v496 = vunpack.c.h.b16 %v299
    %v497 = vunpack.c.l.b16 %v300
    %v498 = vunpack.c.h.b16 %v300
    %v499 = vunpack.c.l.b16 %v301
    %v500 = vunpack.c.h.b16 %v301
    %v501 = vunpack.c.l.b16 %v302
    %v502 = vunpack.c.h.b16 %v302
    %v503 = vunpack.c.l.b16 %v303
    %v504 = vunpack.c.h.b16 %v303
    %v505 = vunpack.c.l.b16 %v304
    %v506 = vunpack.c.h.b16 %v304
    %v507 = vunpack.c.l.b16 %v305
    %v508 = vunpack.c.h.b16 %v305
    %v509 = vunpack.c.l.b16 %v306
    %v510 = vunpack.c.h.b16 %v306
    %v511 = vpack.c.b16 %v385, %v383
    %v512 = vpack.c.b16 %v386, %v384
    %v513 = vpack.c.b16 %v389, %v387
    %v514 = vpack.c.b16 %v390, %v388
    %v515 = vpack.c.b16 %v393, %v391
    %v516 = vpack.c.b16 %v394, %v392
    %v517 = vpack.c.b16 %v397, %v395
    %v518 = vpack.c.b16 %v398, %v396
    %v519 = vpack.c.b16 %v401, %v399
    %v520 = vpack.c.b16 %v402, %v400
    %v521 = vpack.c.b16 %v405, %v403
    %v522 = vpack.c.b16 %v406, %v404
    %v523 = vpack.c.b16 %v409, %v407
    %v524 = vpack.c.b16 %v410, %v408
    %v525 = vpack.c.b16 %v413, %v411
    %v526 = vpack.c.b16 %v414, %v412
    %v527 = vpack.c.b16 %v417, %v415
    %v528 = vpack.c.b16 %v418, %v416
    %v529 = vpack.c.b16 %v421, %v419
    %v530 = vpack.c.b16 %v422, %v420
    %v531 = vpack.c.b16 %v425, %v423
    %v532 = vpack.c.b16 %v426, %v424
    %v533 = vpack.c.b16 %v429, %v427
    %v534 = vpack.c.b16 %v430, %v428
    %v535 = vpack.c.b16 %v433, %v431
    %v536 = vpack.c.b16 %v434, %v432
    %v537 = vpack.c.b16 %v437, %v435
    %v538 = vpack.c.b16 %v438, %v436
    %v539 = vpack.c.b16 %v441, %v439
    %v540 = vpack.c.b16 %v442, %v440
    %v541 = vpack.c.b16 %v445, %v443
    %v542 = vpack.c.b16 %v446, %v444
    %v543 = vpack.c.b16 %v449, %v447
    %v544 = vpack.c.b16 %v450, %v448
    %v545 = vpack.c.b16 %v453, %v451
    %v546 = vpack.c.b16 %v454, %v452
    %v547 = vpack.c.b16 %v457, %v455
    %v548 = vpack.c.b16 %v458, %v456
    %v549 = vpack.c.b16 %v461, %v459
    %v550 = vpack.c.b16 %v462, %v460
    %v551 = vpack.c.b16 %v465, %v463
    %v552 = vpack.c.b16 %v466, %v464
    %v553 = vpack.c.b16 %v469, %v467
    %v554 = vpack.c.b16 %v470, %v468
    %v555 = vpack.c.b16 %v473, %v471
    %v556 = vpack.c.b16 %v474, %v472
    %v557 = vpack.c.b16 %v477, %v475
    %v558 = vpack.c.b16 %v478, %v476
    %v559 = vpack.c.b16 %v481, %v479
    %v560 = vpack.c.b16 %v482, %v480
    %v561 = vpack.c.b16 %v485, %v483
    %v562 = vpack.c.b16 %v486, %v484
    %v563 = vpack.c.b16 %v489, %v487
    %v564 = vpack.c.b16 %v490, %v488
    %v565 = vpack.c.b16 %v493, %v491
    %v566 = vpack.c.b16 %v494, %v492
    %v567 = vpack.c.b16 %v497, %v495
    %v568 = vpack.c.b16 %v498, %v496
    %v569 = vpack.c.b16 %v501, %v499
    %v570 = vpack.c.b16 %v502, %v500
    %v571 = vpack.c.b16 %v505, %v503
    %v572 = vpack.c.b16 %v506, %v504
    %v573 = vpack.c.b16 %v509, %v507
    %v574 = vpack.c.b16 %v510, %v508
    %639 = vmatprep.subr.bf16.mxu0 %v512
    %640 = vmatpush1.bf16.msra.mxu0 %v511
    %641 = vmatprep.subr.bf16.mxu0 %v514
    %642 = vmatpush1.bf16.msra.mxu0 %v513
    %643 = vmatprep.subr.bf16.mxu0 %v516
    %644 = vmatpush1.bf16.msra.mxu0 %v515
    %645 = vmatprep.subr.bf16.mxu0 %v518
    %646 = vmatpush1.bf16.msra.mxu0 %v517
    %647 = vmatprep.subr.bf16.mxu0 %v520
    %648 = vmatpush1.bf16.msra.mxu0 %v519
    %649 = vmatprep.subr.bf16.mxu0 %v522
    %650 = vmatpush1.bf16.msra.mxu0 %v521
    %651 = vmatprep.subr.bf16.mxu0 %v524
    %652 = vmatpush1.bf16.msra.mxu0 %v523
    %653 = vmatprep.subr.bf16.mxu0 %v526
    %654 = vmatpush1.bf16.msra.mxu0 %v525
    %655 = vmatprep.subr.bf16.mxu0 %v528
    %656 = vmatpush1.bf16.msra.mxu0 %v527
    %657 = vmatprep.subr.bf16.mxu0 %v530
    %658 = vmatpush1.bf16.msra.mxu0 %v529
    %659 = vmatprep.subr.bf16.mxu0 %v532
    %660 = vmatpush1.bf16.msra.mxu0 %v531
    %661 = vmatprep.subr.bf16.mxu0 %v534
    %662 = vmatpush1.bf16.msra.mxu0 %v533
    %663 = vmatprep.subr.bf16.mxu0 %v536
    %664 = vmatpush1.bf16.msra.mxu0 %v535
    %665 = vmatprep.subr.bf16.mxu0 %v538
    %666 = vmatpush1.bf16.msra.mxu0 %v537
    %667 = vmatprep.subr.bf16.mxu0 %v540
    %668 = vmatpush1.bf16.msra.mxu0 %v539
    %669 = vmatprep.subr.bf16.mxu0 %v542
    %670 = vmatpush1.bf16.msra.mxu0 %v541
    %671 = vmatprep.mubr.bf16.mxu0 %v240
    %672 = vmatmul.mubr.bf16.gmra.mrb[0].mxu0 %v239
    %v673 = vpop.f32.mrb[0].mxu0
    %v674 = vadd.f32 %v312, %v673
    %v675 = vpop.f32.mrb[0].mxu0
    %v676 = vadd.f32 %v316, %v675
    %v677 = vpop.f32.mrb[0].mxu0
    %v678 = vpop.f32.mrb[0].mxu0
    %679 = vdwg.mxu0
    %680 = vmatprep.subr.bf16.mxu0 %v544
    %681 = vmatpush1.bf16.msra.mxu0 %v543
    %682 = vmatprep.subr.bf16.mxu0 %v546
    %683 = vmatpush1.bf16.msra.mxu0 %v545
    %684 = vmatprep.subr.bf16.mxu0 %v548
    %685 = vmatpush1.bf16.msra.mxu0 %v547
    %686 = vmatprep.subr.bf16.mxu0 %v550
    %687 = vmatpush1.bf16.msra.mxu0 %v549
    %688 = vmatprep.subr.bf16.mxu0 %v552
    %689 = vmatpush1.bf16.msra.mxu0 %v551
    %690 = vmatprep.subr.bf16.mxu0 %v554
    %691 = vmatpush1.bf16.msra.mxu0 %v553
    %692 = vmatprep.subr.bf16.mxu0 %v556
    %693 = vmatpush1.bf16.msra.mxu0 %v555
    %694 = vmatprep.subr.bf16.mxu0 %v558
    %695 = vmatpush1.bf16.msra.mxu0 %v557
    %696 = vmatprep.subr.bf16.mxu0 %v560
    %697 = vmatpush1.bf16.msra.mxu0 %v559
    %698 = vmatprep.subr.bf16.mxu0 %v562
    %699 = vmatpush1.bf16.msra.mxu0 %v561
    %700 = vmatprep.subr.bf16.mxu0 %v564
    %701 = vmatpush1.bf16.msra.mxu0 %v563
    %702 = vmatprep.subr.bf16.mxu0 %v566
    %703 = vmatpush1.bf16.msra.mxu0 %v565
    %704 = vmatprep.subr.bf16.mxu0 %v568
    %705 = vmatpush1.bf16.msra.mxu0 %v567
    %706 = vmatprep.subr.bf16.mxu0 %v570
    %707 = vmatpush1.bf16.msra.mxu0 %v569
    %708 = vmatprep.subr.bf16.mxu0 %v572
    %709 = vmatpush1.bf16.msra.mxu0 %v571
    %710 = vmatprep.subr.bf16.mxu0 %v574
    %711 = vmatpush1.bf16.msra.mxu0 %v573
    %712 = vmatprep.mubr.bf16.mxu0 %v242
    %713 = vmatmul.mubr.bf16.gmra.mrb[0].mxu0 %v241
    %v714 = vpop.f32.mrb[0].mxu0
    %v715 = vadd.f32 %v674, %v714
    %v716 = vpop.f32.mrb[0].mxu0
    %v717 = vadd.f32 %v676, %v716
    %v718 = vpop.f32.mrb[0].mxu0
    %v719 = vpop.f32.mrb[0].mxu0
    %720 = vdwg.mxu0
    %v721 = vmax.f32 %v715, 0.0
    %v722 = vmax.f32 %v717, 0.0
    %v723 = vpack.c.bf16 %v721, %v721
    %v724 = vpack.c.bf16 %v722, %v722
    %v725 = vld [vmem:[#allocation8] sm:$0xf]
    %v726 = vld [vmem:[#allocation8 + $0x4] sm:$0xf]
    %v727 = vld [vmem:[#allocation8 + $0x8] sm:$0xf]
    %v728 = vld [vmem:[#allocation8 + $0xc] sm:$0xf]
    %v729 = vld [vmem:[#allocation8 + $0x10] sm:$0xf]
    %v730 = vld [vmem:[#allocation8 + $0x14] sm:$0xf]
    %v731 = vld [vmem:[#allocation8 + $0x18] sm:$0xf]
    %v732 = vld [vmem:[#allocation8 + $0x1c] sm:$0xf]
    %v733 = vld [vmem:[#allocation8 + $0x20] sm:$0xf]
    %v734 = vld [vmem:[#allocation8 + $0x24] sm:$0xf]
    %v735 = vld [vmem:[#allocation8 + $0x28] sm:$0xf]
    %v736 = vld [vmem:[#allocation8 + $0x2c] sm:$0xf]
    %v737 = vld [vmem:[#allocation8 + $0x30] sm:$0xf]
    %v738 = vld [vmem:[#allocation8 + $0x34] sm:$0xf]
    %v739 = vld [vmem:[#allocation8 + $0x38] sm:$0xf]
    %v740 = vld [vmem:[#allocation8 + $0x3c] sm:$0xf]
    %v741 = vld [vmem:[#allocation8 + $0x40] sm:$0xf]
    %v742 = vld [vmem:[#allocation8 + $0x44] sm:$0xf]
    %v743 = vld [vmem:[#allocation8 + $0x48] sm:$0xf]
    %v744 = vld [vmem:[#allocation8 + $0x4c] sm:$0xf]
    %v745 = vld [vmem:[#allocation8 + $0x50] sm:$0xf]
    %v746 = vld [vmem:[#allocation8 + $0x54] sm:$0xf]
    %v747 = vld [vmem:[#allocation8 + $0x58] sm:$0xf]
    %v748 = vld [vmem:[#allocation8 + $0x5c] sm:$0xf]
    %v749 = vld [vmem:[#allocation8 + $0x60] sm:$0xf]
    %v750 = vld [vmem:[#allocation8 + $0x64] sm:$0xf]
    %v751 = vld [vmem:[#allocation8 + $0x68] sm:$0xf]
    %v752 = vld [vmem:[#allocation8 + $0x6c] sm:$0xf]
    %v753 = vld [vmem:[#allocation8 + $0x70] sm:$0xf]
    %v754 = vld [vmem:[#allocation8 + $0x74] sm:$0xf]
    %v755 = vld [vmem:[#allocation8 + $0x78] sm:$0xf]
    %v756 = vld [vmem:[#allocation8 + $0x7c] sm:$0xf]
    %v757 = vld [vmem:[%s5 + $0x6] sm:$0x1]
    %v759 = vlaneseq
    %v760 = vshrl.u32 %v759, 7
    %v761 = vsub.s32 0, %v760
    %v762 = vrot.slane %v757, %v761
    %v796 = vunpack.c.l.b16 %v725
    %v797 = vunpack.c.l.b16 %v726
    %v798 = vunpack.c.l.b16 %v727
    %v799 = vunpack.c.l.b16 %v728
    %v800 = vunpack.c.l.b16 %v729
    %v801 = vunpack.c.l.b16 %v730
    %v802 = vunpack.c.l.b16 %v731
    %v803 = vunpack.c.l.b16 %v732
    %v804 = vunpack.c.l.b16 %v733
    %v805 = vunpack.c.l.b16 %v734
    %v806 = vunpack.c.l.b16 %v735
    %v807 = vunpack.c.l.b16 %v736
    %v808 = vunpack.c.l.b16 %v737
    %v809 = vunpack.c.l.b16 %v738
    %v810 = vunpack.c.l.b16 %v739
    %v811 = vunpack.c.l.b16 %v740
    %v812 = vunpack.c.l.b16 %v741
    %v813 = vunpack.c.l.b16 %v742
    %v814 = vunpack.c.l.b16 %v743
    %v815 = vunpack.c.l.b16 %v744
    %v816 = vunpack.c.l.b16 %v745
    %v817 = vunpack.c.l.b16 %v746
    %v818 = vunpack.c.l.b16 %v747
    %v819 = vunpack.c.l.b16 %v748
    %v820 = vunpack.c.l.b16 %v749
    %v821 = vunpack.c.l.b16 %v750
    %v822 = vunpack.c.l.b16 %v751
    %v823 = vunpack.c.l.b16 %v752
    %v824 = vunpack.c.l.b16 %v753
    %v825 = vunpack.c.l.b16 %v754
    %v826 = vunpack.c.l.b16 %v755
    %v827 = vunpack.c.l.b16 %v756
    %v828 = vpack.c.b16 %v797, %v796
    %v829 = vpack.c.b16 %v799, %v798
    %v830 = vpack.c.b16 %v801, %v800
    %v831 = vpack.c.b16 %v803, %v802
    %v832 = vpack.c.b16 %v805, %v804
    %v833 = vpack.c.b16 %v807, %v806
    %v834 = vpack.c.b16 %v809, %v808
    %v835 = vpack.c.b16 %v811, %v810
    %v836 = vpack.c.b16 %v813, %v812
    %v837 = vpack.c.b16 %v815, %v814
    %v838 = vpack.c.b16 %v817, %v816
    %v839 = vpack.c.b16 %v819, %v818
    %v840 = vpack.c.b16 %v821, %v820
    %v841 = vpack.c.b16 %v823, %v822
    %v842 = vpack.c.b16 %v825, %v824
    %v843 = vpack.c.b16 %v827, %v826
    %860 = vmatprep.subr.bf16.mxu0 0
    %861 = vmatpush1.bf16.msra.mxu0 %v828
    %862 = vmatprep.subr.bf16.mxu0 0
    %863 = vmatpush1.bf16.msra.mxu0 %v829
    %864 = vmatprep.subr.bf16.mxu0 0
    %865 = vmatpush1.bf16.msra.mxu0 %v830
    %866 = vmatprep.subr.bf16.mxu0 0
    %867 = vmatpush1.bf16.msra.mxu0 %v831
    %868 = vmatprep.subr.bf16.mxu0 0
    %869 = vmatpush1.bf16.msra.mxu0 %v832
    %870 = vmatprep.subr.bf16.mxu0 0
    %871 = vmatpush1.bf16.msra.mxu0 %v833
    %872 = vmatprep.subr.bf16.mxu0 0
    %873 = vmatpush1.bf16.msra.mxu0 %v834
    %874 = vmatprep.subr.bf16.mxu0 0
    %875 = vmatpush1.bf16.msra.mxu0 %v835
    %876 = vmatprep.subr.bf16.mxu0 0
    %877 = vmatpush1.bf16.msra.mxu0 %v836
    %878 = vmatprep.subr.bf16.mxu0 0
    %879 = vmatpush1.bf16.msra.mxu0 %v837
    %880 = vmatprep.subr.bf16.mxu0 0
    %881 = vmatpush1.bf16.msra.mxu0 %v838
    %882 = vmatprep.subr.bf16.mxu0 0
    %883 = vmatpush1.bf16.msra.mxu0 %v839
    %884 = vmatprep.subr.bf16.mxu0 0
    %885 = vmatpush1.bf16.msra.mxu0 %v840
    %886 = vmatprep.subr.bf16.mxu0 0
    %887 = vmatpush1.bf16.msra.mxu0 %v841
    %888 = vmatprep.subr.bf16.mxu0 0
    %889 = vmatpush1.bf16.msra.mxu0 %v842
    %890 = vmatprep.subr.bf16.mxu0 0
    %891 = vmatpush1.bf16.msra.mxu0 %v843
    %892 = vmatprep.mubr.bf16.mxu0 %v724
    %893 = vmatmul.mubr.bf16.gmra.mrb[0].mxu0 %v723
    %v894 = vpop.f32.mrb[0].mxu0
    %v895 = vadd.f32 %v762, %v894
    %v896 = vpop.f32.mrb[0].mxu0
    %v897 = vpop.f32.mrb[0].mxu0
    %v898 = vpop.f32.mrb[0].mxu0
    %899 = vdwg.mxu0
    %v900 = vmax.f32 %v895, 0.0
    %v901 = vpack.c.bf16 %v900, %v900
    %v902 = vld [vmem:[#allocation10] sm:$0xf]
    %v903 = vld [vmem:[#allocation10 + $0x4] sm:$0xf]
    %v904 = vld [vmem:[#allocation10 + $0x8] sm:$0xf]
    %v905 = vld [vmem:[#allocation10 + $0xc] sm:$0xf]
    %v906 = vld [vmem:[#allocation10 + $0x10] sm:$0xf]
    %v907 = vld [vmem:[#allocation10 + $0x14] sm:$0xf]
    %v908 = vld [vmem:[#allocation10 + $0x18] sm:$0xf]
    %v909 = vld [vmem:[#allocation10 + $0x1c] sm:$0xf]
    %v910 = vld [vmem:[#allocation10 + $0x20] sm:$0xf]
    %v911 = vld [vmem:[#allocation10 + $0x24] sm:$0xf]
    %v912 = vld [vmem:[#allocation10 + $0x28] sm:$0xf]
    %v913 = vld [vmem:[#allocation10 + $0x2c] sm:$0xf]
    %v914 = vld [vmem:[#allocation10 + $0x30] sm:$0xf]
    %v915 = vld [vmem:[#allocation10 + $0x34] sm:$0xf]
    %v916 = vld [vmem:[#allocation10 + $0x38] sm:$0xf]
    %v917 = vld [vmem:[#allocation10 + $0x3c] sm:$0xf]
    %v918 = vld [vmem:[%s5 + $0x7] sm:$0x1]
    %v920 = vlaneseq
    %v921 = vshrl.u32 %v920, 7
    %v922 = vsub.s32 0, %v921
    %v923 = vrot.slane %v918, %v922
    %v941 = vunpack.c.l.b16 %v902
    %v942 = vunpack.c.l.b16 %v903
    %v943 = vunpack.c.l.b16 %v904
    %v944 = vunpack.c.l.b16 %v905
    %v945 = vunpack.c.l.b16 %v906
    %v946 = vunpack.c.l.b16 %v907
    %v947 = vunpack.c.l.b16 %v908
    %v948 = vunpack.c.l.b16 %v909
    %v949 = vunpack.c.l.b16 %v910
    %v950 = vunpack.c.l.b16 %v911
    %v951 = vunpack.c.l.b16 %v912
    %v952 = vunpack.c.l.b16 %v913
    %v953 = vunpack.c.l.b16 %v914
    %v954 = vunpack.c.l.b16 %v915
    %v955 = vunpack.c.l.b16 %v916
    %v956 = vunpack.c.l.b16 %v917
    %v957 = vpack.c.b16 %v942, %v941
    %v958 = vpack.c.b16 %v944, %v943
    %v959 = vpack.c.b16 %v946, %v945
    %v960 = vpack.c.b16 %v948, %v947
    %v961 = vpack.c.b16 %v950, %v949
    %v962 = vpack.c.b16 %v952, %v951
    %v963 = vpack.c.b16 %v954, %v953
    %v964 = vpack.c.b16 %v956, %v955
    %973 = vmatprep.subr.bf16.mxu0 0
    %974 = vmatpush1.bf16.msra.mxu0 %v957
    %975 = vmatprep.subr.bf16.mxu0 0
    %976 = vmatpush1.bf16.msra.mxu0 %v958
    %977 = vmatprep.subr.bf16.mxu0 0
    %978 = vmatpush1.bf16.msra.mxu0 %v959
    %979 = vmatprep.subr.bf16.mxu0 0
    %980 = vmatpush1.bf16.msra.mxu0 %v960
    %981 = vmatprep.subr.bf16.mxu0 0
    %982 = vmatpush1.bf16.msra.mxu0 %v961
    %983 = vmatprep.subr.bf16.mxu0 0
    %984 = vmatpush1.bf16.msra.mxu0 %v962
    %985 = vmatprep.subr.bf16.mxu0 0
    %986 = vmatpush1.bf16.msra.mxu0 %v963
    %987 = vmatprep.subr.bf16.mxu0 0
    %988 = vmatpush1.bf16.msra.mxu0 %v964
    %989 = vmatprep.subr.bf16.mxu0 0
    %990 = vmatpush1.bf16.msra.mxu0 0
    %991 = vmatprep.subr.bf16.mxu0 0
    %992 = vmatpush1.bf16.msra.mxu0 0
    %993 = vmatprep.subr.bf16.mxu0 0
    %994 = vmatpush1.bf16.msra.mxu0 0
    %995 = vmatprep.subr.bf16.mxu0 0
    %996 = vmatpush1.bf16.msra.mxu0 0
    %997 = vmatprep.subr.bf16.mxu0 0
    %998 = vmatpush1.bf16.msra.mxu0 0
    %999 = vmatprep.subr.bf16.mxu0 0
    %1000 = vmatpush1.bf16.msra.mxu0 0
    %1001 = vmatprep.subr.bf16.mxu0 0
    %1002 = vmatpush1.bf16.msra.mxu0 0
    %1003 = vmatprep.subr.bf16.mxu0 0
    %1004 = vmatpush1.bf16.msra.mxu0 0
    %1005 = vmatprep.mubr.bf16.mxu0 0
    %1006 = vmatmul.mubr.bf16.gmra.mrb[0].mxu0 %v901
    %v1007 = vpop.f32.mrb[0].mxu0
    %v1008 = vadd.f32 %v923, %v1007
    %v1009 = vpop.f32.mrb[0].mxu0
    %v1010 = vpop.f32.mrb[0].mxu0
    %v1011 = vpop.f32.mrb[0].mxu0
    %1012 = vdwg.mxu0
    %1013 = vst [vmem:[#allocation11] sm:$0x3] %v1008
    // Predicated region
    $region46: #{tpu_custom_call.1} parent=1 // pred_check
      _
    $region47: #{tpu_custom_call.1} parent=1 // pred_check_branch
      %1015 = sbr.rel (0) target = $region49
    $region48: #{tpu_custom_call.1} parent=1 // pred_region
      %s1017 = ssub.s32 32, 32
      %1018 = vsyncadd [#allocation4], %s1017
      %s1020 = sshll.u32 [#allocation11], 4
      %s1021 = int_to_ptr.vmem [resolvable:$true] %s1020
      %1023 = dma.vmem_to_hbm [thread:$0]  %s1021, 32, %s6, [#allocation4]
    $region49: #{tpu_custom_call.1} parent=1 // pred_fallthru
      _
    // Predicated region
    $region50: #{tpu_custom_call.1} parent=1 // pred_check
      _
    $region51: #{tpu_custom_call.1} parent=1 // pred_check_branch
      %1025 = sbr.rel (0) target = $region53
    $region52: #{tpu_custom_call.1} parent=1 // pred_region
      %1026 = dma.done [#allocation4], 32
    $region53: #{tpu_custom_call.1} parent=1 // pred_fallthru
      _
    %1027 = vsyncpa [#allocation3], 1
    %1028 = vsyncpa [#allocation6], 1
    %1029 = vsyncpa [#allocation9], 1
    %1030 = vsyncpa [#allocation4], 1

</llo_original>
